<compile_context>
chip_gen: v7x
topology: tpu7x:2x2x1
jax: 0.10.0
libtpu: 0.0.40
codegen_flags: <defaults>
</compile_context>

<pallas_src>
import math

import jax
import jax.numpy as jnp
from jax.experimental import pallas as pl
from jax.experimental.pallas import tpu as pltpu

EPS = 1e-5


# ------------------------------ kernel helpers --------------------------------
def _silu(h):
    # h * sigmoid(h) == 0.5 * h * (1 + tanh(0.5 * h)) — one EUP push, not two.
    return 0.5 * h * (1.0 + jnp.tanh(0.5 * h))


def _layer_norm(z, w, b):
    mu = jnp.mean(z, axis=-1, keepdims=True)
    zc = z - mu
    var = jnp.mean(zc * zc, axis=-1, keepdims=True)
    return zc * jax.lax.rsqrt(var + EPS) * w + b


# ------------------------ kernel A: weights resident ---------------------------
def mlp_resident_kernel(x_ref, w1_ref, b1_ref, w2_ref, b2_ref, lnw_ref, lnb_ref,
                        out_ref):
    x = x_ref[...]                                           # (tm, D) f32 residual
    h = jnp.dot(x.astype(jnp.bfloat16), w1_ref[...],
                preferred_element_type=jnp.float32) + b1_ref[...]
    h = _silu(h)                                             # SiLU (dropout no-op)
    y = jnp.dot(h.astype(jnp.bfloat16), w2_ref[...],
                preferred_element_type=jnp.float32) + b2_ref[...]
    out = _layer_norm(x + y, lnw_ref[...], lnb_ref[...])
    out_ref[...] = out.astype(out_ref.dtype)


# ------------------------ kernel B: weights streamed ---------------------------
def mlp_streamed_kernel(x_ref, w1_ref, b1_ref, w2_ref, b2_ref, lnw_ref, lnb_ref,
                        out_ref, acc_ref):
    k = pl.program_id(1)
    nk = pl.num_programs(1)

    @pl.when(k == 0)
    def _init():
        # Seed with fc2 bias: moves the (tm, D) add off the finalize step.
        acc_ref[...] = jnp.broadcast_to(b2_ref[...], acc_ref.shape).astype(jnp.float32)

    x = x_ref[...]                                           # (tm, D) f32 residual
    h = jnp.dot(x.astype(jnp.bfloat16), w1_ref[...],
                preferred_element_type=jnp.float32) + b1_ref[...]
    h = _silu(h)
    acc_ref[...] += jnp.dot(h.astype(jnp.bfloat16), w2_ref[...],
                            preferred_element_type=jnp.float32)

    @pl.when(k == nk - 1)
    def _finalize():
        out = _layer_norm(x + acc_ref[...], lnw_ref[...], lnb_ref[...])
        out_ref[...] = out.astype(out_ref.dtype)


# ------------------------------ tiling helpers ---------------------------------
def _round_up(n, m):
    return ((n + m - 1) // m) * m


def _vmem_budget_bytes():
    # Per-TensorCore VMEM capacity minus headroom.  Fallback is v7x-safe (64 MiB).
    try:
        cap = int(getattr(pltpu.get_tpu_info(), "vmem_capacity_bytes", 64 << 20))
    except Exception:
        cap = 64 << 20
    return max(cap - (16 << 20), 24 << 20)


def _choose_row_tile(M, max_tm=512):
    tm = min(max_tm, _round_up(M, 8))
    m_pad = _round_up(M, tm)
    # Give the "parallel" row axis >= 2 steps so v7x's 2 TensorCores both work.
    if m_pad // tm == 1 and tm >= 256:
        tm = _round_up(tm // 2, 8)
        m_pad = _round_up(M, tm)
    return tm, m_pad


def _choose_k_tile(H, D):
    # Keep each (D, tk) bf16 weight tile around <= 2 MiB (it is double-buffered).
    limit = max(128, (1 << 20) // max(D, 1))
    for t in (512, 256, 128):
        if t <= limit and H % t == 0:
            return t
    return H                              # tiny H (toy shapes): one full block


def _resident_vmem_bytes(tm, D, H):
    f32, bf16 = 4, 2
    per_buf = (tm * D * f32                      # x tile
               + D * H * bf16 + H * f32          # w1 + b1
               + H * D * bf16 + D * f32          # w2 + b2
               + 2 * D * f32                     # LN weight / bias
               + tm * D * f32)                   # out tile
    return 2 * per_buf                           # pipeline double-buffering


def _streamed_vmem_bytes(tm, tk, D, H):
    f32, bf16 = 4, 2
    per_buf = (tm * D * f32
               + D * tk * bf16 + tk * f32
               + tk * D * bf16 + D * f32
               + 2 * D * f32
               + tm * D * f32)
    return 2 * per_buf + tm * D * f32            # + f32 accumulator scratch


# --------------------------------- wrapper --------------------------------------
def run_mlp(x, params):
    B, L, D = x.shape
    M = B * L
    w1, b1 = params["w1t"], params["b1"]         # (D, 4D) bf16, (1, 4D) f32
    w2, b2 = params["w2t"], params["b2"]         # (4D, D) bf16, (1, D) f32
    lnw, lnb = params["ln_w"], params["ln_b"]    # (1, D) f32
    H = w1.shape[1]

    budget = _vmem_budget_bytes()
    tm, m_pad = _choose_row_tile(M)

    x2 = x.reshape(M, D).astype(jnp.float32)
    if m_pad != M:
        x2 = jnp.pad(x2, ((0, m_pad - M), (0, 0)))

    if _resident_vmem_bytes(tm, D, H) <= budget:
        # -------- weights resident in VMEM, single "parallel" row grid --------
        grid = (m_pad // tm,)
        in_specs = [
            pl.BlockSpec((tm, D), lambda i: (i, 0)),    # x row tile
            pl.BlockSpec((D, H), lambda i: (0, 0)),     # fc1 weight (resident)
            pl.BlockSpec((1, H), lambda i: (0, 0)),     # fc1 bias
            pl.BlockSpec((H, D), lambda i: (0, 0)),     # fc2 weight (resident)
            pl.BlockSpec((1, D), lambda i: (0, 0)),     # fc2 bias
            pl.BlockSpec((1, D), lambda i: (0, 0)),     # LN weight
            pl.BlockSpec((1, D), lambda i: (0, 0)),     # LN bias
        ]
        out_specs = pl.BlockSpec((tm, D), lambda i: (i, 0))
        kernel = mlp_resident_kernel
        scratch_shapes = []
        dims = ("parallel",)
        vmem_est = _resident_vmem_bytes(tm, D, H)
    else:
        # -------- large D: stream weight tiles over the 4*D reduction axis ----
        tk = _choose_k_tile(H, D)
        grid = (m_pad // tm, H // tk)
        in_specs = [
            pl.BlockSpec((tm, D), lambda i, k: (i, 0)), # x (same block across k)
            pl.BlockSpec((D, tk), lambda i, k: (0, k)), # fc1 weight tile
            pl.BlockSpec((1, tk), lambda i, k: (0, k)), # fc1 bias tile
            pl.BlockSpec((tk, D), lambda i, k: (k, 0)), # fc2 weight tile
            pl.BlockSpec((1, D), lambda i, k: (0, 0)),  # fc2 bias
            pl.BlockSpec((1, D), lambda i, k: (0, 0)),  # LN weight
            pl.BlockSpec((1, D), lambda i, k: (0, 0)),  # LN bias
        ]
        out_specs = pl.BlockSpec((tm, D), lambda i, k: (i, 0))  # resident across k
        kernel = mlp_streamed_kernel
        scratch_shapes = [pltpu.VMEM((tm, D), jnp.float32)]
        dims = ("parallel", "arbitrary")
        vmem_est = _streamed_vmem_bytes(tm, tk, D, H)

    vmem_limit = int(min(budget, max(2 * vmem_est, 32 << 20)))

    out2 = pl.pallas_call(
        kernel,
        grid=grid,
        in_specs=in_specs,
        out_specs=out_specs,
        out_shape=jax.ShapeDtypeStruct((m_pad, D), jnp.float32),
        scratch_shapes=scratch_shapes,
        compiler_params=pltpu.CompilerParams(
            dimension_semantics=dims,
            vmem_limit_bytes=vmem_limit),
    )(x2, w1, b1, w2, b2, lnw, lnb)

    return out2[:M].reshape(B, L, D)


# ------------------------------ parameter init ----------------------------------
def init_params(key, D):
    def lin(k, fan_in, fan_out):
        k1, k2 = jax.random.split(k)
        bound = 1.0 / math.sqrt(fan_in)
        wt = jax.random.uniform(k1, (fan_in, fan_out), jnp.float32, -bound, bound)
        b = jax.random.uniform(k2, (1, fan_out), jnp.float32, -bound, bound)
        return wt, b

    k1, k2 = jax.random.split(key)
    w1t, b1 = lin(k1, D, 4 * D)                  # fc1, pre-transposed to (in, out)
    w2t, b2 = lin(k2, 4 * D, D)                  # fc2, pre-transposed to (in, out)
    return {
        "w1t": w1t.astype(jnp.bfloat16),         # bf16 MXU operand / HBM storage
        "b1": b1,
        "w2t": w2t.astype(jnp.bfloat16),
        "b2": b2,
        "ln_w": jnp.ones((1, D), jnp.float32),
        "ln_b": jnp.zeros((1, D), jnp.float32),
    }


# ------------------------------ pure-JAX reference -------------------------------
def ref_mlp(x, p):
    # Same precision policy as the kernel: bf16 matmul operands, f32 accumulate,
    # f32 bias / residual / LayerNorm.  Dropout is an eval-mode no-op.
    B, L, D = x.shape
    x2 = x.reshape(-1, D).astype(jnp.float32)
    h = jnp.dot(x2.astype(jnp.bfloat16), p["w1t"],
                preferred_element_type=jnp.float32) + p["b1"]
    h = h * jax.nn.sigmoid(h)                    # SiLU
    y = jnp.dot(h.astype(jnp.bfloat16), p["w2t"],
                preferred_element_type=jnp.float32) + p["b2"]
    z = x2 + y
    mu = jnp.mean(z, axis=-1, keepdims=True)
    zc = z - mu
    var = jnp.mean(zc * zc, axis=-1, keepdims=True)
    out = zc * jax.lax.rsqrt(var + EPS) * p["ln_w"] + p["ln_b"]
    return out.reshape(B, L, D)


# ----------------------------------- main ----------------------------------------
if __name__ == "__main__":
    # config: hidden_size=32, dropout=0.0 (eval), batch=2, seq=8
    B, L, D = 2, 8, 32

    key = jax.random.PRNGKey(0)
    kx, kp = jax.random.split(key)
    x = jax.random.normal(kx, (B, L, D), dtype=jnp.float32)
    params = init_params(kp, D)

    out = run_mlp(x, params)
    out = jax.block_until_ready(out)

    ref = ref_mlp(x, params)
    assert out.shape == (B, L, D)
    assert jnp.allclose(out, ref, rtol=1e-3, atol=1e-3), "output mismatch"

    print("KERNEL_OK")
</pallas_src>

<mosaic_0001>
module attributes {stable_mosaic.version = 11 : i64} {
  func.func @mlp_resident_kernel(%arg0: i32, %arg1: memref<16x32xf32, #tpu.memory_space<vmem>>, %arg2: memref<32x128xbf16, #tpu.memory_space<vmem>>, %arg3: memref<1x128xf32, #tpu.memory_space<vmem>>, %arg4: memref<128x32xbf16, #tpu.memory_space<vmem>>, %arg5: memref<1x32xf32, #tpu.memory_space<vmem>>, %arg6: memref<1x32xf32, #tpu.memory_space<vmem>>, %arg7: memref<1x32xf32, #tpu.memory_space<vmem>>, %arg8: memref<16x32xf32, #tpu.memory_space<vmem>>) attributes {dimension_semantics = [#tpu.dimension_semantics<parallel>], iteration_bounds = array<i64: 1>, scalar_prefetch = 0 : i64, scratch_operands = 0 : i64, tpu.core_type = #tpu.core_type<tc>, window_params = [{transform_indices = @transform_0, window_bounds = array<i64: 16, 32>}, {pipeline_mode = #tpu.pipeline_mode<synchronous>, transform_indices = @transform_1, window_bounds = array<i64: 32, 128>}, {pipeline_mode = #tpu.pipeline_mode<synchronous>, transform_indices = @transform_2, window_bounds = array<i64: 1, 128>}, {pipeline_mode = #tpu.pipeline_mode<synchronous>, transform_indices = @transform_3, window_bounds = array<i64: 128, 32>}, {pipeline_mode = #tpu.pipeline_mode<synchronous>, transform_indices = @transform_4, window_bounds = array<i64: 1, 32>}, {pipeline_mode = #tpu.pipeline_mode<synchronous>, transform_indices = @transform_5, window_bounds = array<i64: 1, 32>}, {pipeline_mode = #tpu.pipeline_mode<synchronous>, transform_indices = @transform_6, window_bounds = array<i64: 1, 32>}, {transform_indices = @transform_7, window_bounds = array<i64: 16, 32>}]} {
    %c0 = arith.constant 0 : index
    %c0_0 = arith.constant 0 : index
    %0 = vector.load %arg1[%c0, %c0_0] : memref<16x32xf32, #tpu.memory_space<vmem>>, vector<16x32xf32>
    %1 = arith.truncf %0 : vector<16x32xf32> to vector<16x32xbf16>
    %c0_1 = arith.constant 0 : index
    %c0_2 = arith.constant 0 : index
    %2 = vector.load %arg2[%c0_1, %c0_2] : memref<32x128xbf16, #tpu.memory_space<vmem>>, vector<32x128xbf16>
    %cst = arith.constant dense<0.000000e+00> : vector<16x128xf32>
    %3 = tpu.matmul %1, %2, %cst {dimension_numbers = #tpu.dot_dimension_numbers<[1], [0], [0], [1], [0, 0, 1, 1], [], []>} : vector<16x32xbf16>, vector<32x128xbf16>, vector<16x128xf32> -> vector<16x128xf32>
    %c0_3 = arith.constant 0 : index
    %c0_4 = arith.constant 0 : index
    %4 = vector.load %arg3[%c0_3, %c0_4] : memref<1x128xf32, #tpu.memory_space<vmem>>, vector<1x128xf32>
    %5 = vector.broadcast %4 : vector<1x128xf32> to vector<16x128xf32>
    %6 = arith.addf %3, %5 : vector<16x128xf32>
    %cst_5 = arith.constant 5.000000e-01 : f32
    %7 = vector.broadcast %cst_5 : f32 to vector<16x128xf32>
    %8 = arith.mulf %7, %6 : vector<16x128xf32>
    %cst_6 = arith.constant 5.000000e-01 : f32
    %9 = vector.broadcast %cst_6 : f32 to vector<16x128xf32>
    %10 = arith.mulf %9, %6 : vector<16x128xf32>
    %11 = math.tanh %10 : vector<16x128xf32>
    %cst_7 = arith.constant 1.000000e+00 : f32
    %12 = vector.broadcast %cst_7 : f32 to vector<16x128xf32>
    %13 = arith.addf %12, %11 : vector<16x128xf32>
    %14 = arith.mulf %8, %13 : vector<16x128xf32>
    %15 = arith.truncf %14 : vector<16x128xf32> to vector<16x128xbf16>
    %c0_8 = arith.constant 0 : index
    %c0_9 = arith.constant 0 : index
    %16 = vector.load %arg4[%c0_8, %c0_9] : memref<128x32xbf16, #tpu.memory_space<vmem>>, vector<128x32xbf16>
    %cst_10 = arith.constant dense<0.000000e+00> : vector<16x32xf32>
    %17 = tpu.matmul %15, %16, %cst_10 {dimension_numbers = #tpu.dot_dimension_numbers<[1], [0], [0], [1], [0, 0, 1, 1], [], []>} : vector<16x128xbf16>, vector<128x32xbf16>, vector<16x32xf32> -> vector<16x32xf32>
    %c0_11 = arith.constant 0 : index
    %c0_12 = arith.constant 0 : index
    %18 = vector.load %arg5[%c0_11, %c0_12] : memref<1x32xf32, #tpu.memory_space<vmem>>, vector<1x32xf32>
    %19 = vector.broadcast %18 : vector<1x32xf32> to vector<16x32xf32>
    %20 = arith.addf %17, %19 : vector<16x32xf32>
    %21 = arith.addf %0, %20 : vector<16x32xf32>
    %c0_13 = arith.constant 0 : index
    %c0_14 = arith.constant 0 : index
    %22 = vector.load %arg6[%c0_13, %c0_14] : memref<1x32xf32, #tpu.memory_space<vmem>>, vector<1x32xf32>
    %c0_15 = arith.constant 0 : index
    %c0_16 = arith.constant 0 : index
    %23 = vector.load %arg7[%c0_15, %c0_16] : memref<1x32xf32, #tpu.memory_space<vmem>>, vector<1x32xf32>
    %cst_17 = arith.constant dense<0.000000e+00> : vector<16xf32>
    %24 = vector.multi_reduction <add>, %21, %cst_17 [1] : vector<16x32xf32> to vector<16xf32>
    %25 = vector.shape_cast %24 : vector<16xf32> to vector<16x1xf32>
    %cst_18 = arith.constant 3.200000e+01 : f32
    %26 = vector.broadcast %cst_18 : f32 to vector<16x1xf32>
    %27 = arith.divf %25, %26 : vector<16x1xf32>
    %28 = vector.broadcast %27 : vector<16x1xf32> to vector<16x32xf32>
    %29 = arith.subf %21, %28 : vector<16x32xf32>
    %30 = arith.mulf %29, %29 : vector<16x32xf32>
    %cst_19 = arith.constant dense<0.000000e+00> : vector<16xf32>
    %31 = vector.multi_reduction <add>, %30, %cst_19 [1] : vector<16x32xf32> to vector<16xf32>
    %32 = vector.shape_cast %31 : vector<16xf32> to vector<16x1xf32>
    %cst_20 = arith.constant 3.200000e+01 : f32
    %33 = vector.broadcast %cst_20 : f32 to vector<16x1xf32>
    %34 = arith.divf %32, %33 : vector<16x1xf32>
    %cst_21 = arith.constant 9.99999974E-6 : f32
    %35 = vector.broadcast %cst_21 : f32 to vector<16x1xf32>
    %36 = arith.addf %34, %35 : vector<16x1xf32>
    %37 = math.rsqrt %36 : vector<16x1xf32>
    %38 = vector.broadcast %37 : vector<16x1xf32> to vector<16x32xf32>
    %39 = arith.mulf %29, %38 : vector<16x32xf32>
    %40 = vector.broadcast %22 : vector<1x32xf32> to vector<16x32xf32>
    %41 = arith.mulf %39, %40 : vector<16x32xf32>
    %42 = vector.broadcast %23 : vector<1x32xf32> to vector<16x32xf32>
    %43 = arith.addf %41, %42 : vector<16x32xf32>
    %c0_22 = arith.constant 0 : index
    %c0_23 = arith.constant 0 : index
    %44 = vector.load %arg8[%c0_22, %c0_23] : memref<16x32xf32, #tpu.memory_space<vmem>>, vector<16x32xf32>
    tpu.vector_store %arg8[%c0_22, %c0_23], %43 {strides = array<i32>} : memref<16x32xf32, #tpu.memory_space<vmem>>, vector<16x32xf32>,
    return
  }
  func.func @transform_0(%arg0: i32) -> (i32, i32) {
    %c0_i32 = arith.constant 0 : i32
    %c0_i32_0 = arith.constant 0 : i32
    return %arg0, %c0_i32 : i32, i32
  }
  func.func @transform_1(%arg0: i32) -> (i32, i32) {
    %c0_i32 = arith.constant 0 : i32
    %c0_i32_0 = arith.constant 0 : i32
    %c0_i32_1 = arith.constant 0 : i32
    return %c0_i32, %c0_i32_0 : i32, i32
  }
  func.func @transform_2(%arg0: i32) -> (i32, i32) {
    %c0_i32 = arith.constant 0 : i32
    %c0_i32_0 = arith.constant 0 : i32
    %c0_i32_1 = arith.constant 0 : i32
    return %c0_i32, %c0_i32_0 : i32, i32
  }
  func.func @transform_3(%arg0: i32) -> (i32, i32) {
    %c0_i32 = arith.constant 0 : i32
    %c0_i32_0 = arith.constant 0 : i32
    %c0_i32_1 = arith.constant 0 : i32
    return %c0_i32, %c0_i32_0 : i32, i32
  }
  func.func @transform_4(%arg0: i32) -> (i32, i32) {
    %c0_i32 = arith.constant 0 : i32
    %c0_i32_0 = arith.constant 0 : i32
    %c0_i32_1 = arith.constant 0 : i32
    return %c0_i32, %c0_i32_0 : i32, i32
  }
  func.func @transform_5(%arg0: i32) -> (i32, i32) {
    %c0_i32 = arith.constant 0 : i32
    %c0_i32_0 = arith.constant 0 : i32
    %c0_i32_1 = arith.constant 0 : i32
    return %c0_i32, %c0_i32_0 : i32, i32
  }
  func.func @transform_6(%arg0: i32) -> (i32, i32) {
    %c0_i32 = arith.constant 0 : i32
    %c0_i32_0 = arith.constant 0 : i32
    %c0_i32_1 = arith.constant 0 : i32
    return %c0_i32, %c0_i32_0 : i32, i32
  }
  func.func @transform_7(%arg0: i32) -> (i32, i32) {
    %c0_i32 = arith.constant 0 : i32
    %c0_i32_0 = arith.constant 0 : i32
    return %arg0, %c0_i32 : i32, i32
  }
}

</mosaic_0001>

<llo_original>
// kernel: tpu_custom_call.1
$region0: #{tpu_custom_call.1}
  #allocation0 [shape = 'u32[]', space=smem, size = 0x4, offset = 0x4, fixed_abs, tag = 'smem constant byte address 0x4 - core index']
  #allocation1 [shape = 'u32[144,128]{1,0:T(1,128)}', space=vmem, size = 0x12000, scoped, tag = 'internal scratch']
  %s0 = inlined_call_operand.vmem [shape: f32[16,32], index: 0, kind: input, shape index: {}]
  %s1 = inlined_call_operand.vmem [shape: bf16[32,128], index: 1, kind: input, shape index: {}]
  %s2 = inlined_call_operand.vmem [shape: f32[1,128], index: 2, kind: input, shape index: {}]
  %s3 = inlined_call_operand.vmem [shape: bf16[128,32], index: 3, kind: input, shape index: {}]
  %s4 = inlined_call_operand.vmem [shape: f32[1,32], index: 4, kind: input, shape index: {}]
  %s5 = inlined_call_operand.vmem [shape: f32[1,32], index: 5, kind: input, shape index: {}]
  %s6 = inlined_call_operand.vmem [shape: f32[1,32], index: 6, kind: input, shape index: {}]
  %s7 = inlined_call_operand.hbm [shape: f32[16,32], index: 7, kind: output, shape index: {}]
  %s8 = sld [smem:[#allocation0]]
  $region38: #{tpu_custom_call.1} parent=0
    _
  %s10 = ssub.s32 1, %s8
  %s11 = scalar_select 0, %s10, %s8
  $region1: #{tpu_custom_call.1} parent=0
    #allocation2 [shape = 'u8[8192]{0}', space=vmem, size = 0x2000, scoped, tag = 'output window, operand 0, single buffered']
    #allocation3 [shape = 's32[1]{0}', space=sflag, size = 0x4, scoped, tag = 'scoped memory for tpu_custom_call.1']
    %12 = vsyncpa [#allocation3], 0
    // Predicated region
    $region2: #{tpu_custom_call.1} parent=1 // pred_check
      _
    $region3: #{tpu_custom_call.1} parent=1 // pred_check_branch
      %14 = sbr.rel (0) target = $region5
    $region4: #{tpu_custom_call.1} parent=1 // pred_region
      _
    $region5: #{tpu_custom_call.1} parent=1 // pred_fallthru
      _
    // Predicated region
    $region6: #{tpu_custom_call.1} parent=1 // pred_check
      _
    $region7: #{tpu_custom_call.1} parent=1 // pred_check_branch
      %16 = sbr.rel (0) target = $region9
    $region8: #{tpu_custom_call.1} parent=1 // pred_region
      _
    $region9: #{tpu_custom_call.1} parent=1 // pred_fallthru
      _
    // Predicated region
    $region10: #{tpu_custom_call.1} parent=1 // pred_check
      _
    $region11: #{tpu_custom_call.1} parent=1 // pred_check_branch
      %18 = sbr.rel (0) target = $region13
    $region12: #{tpu_custom_call.1} parent=1 // pred_region
      _
    $region13: #{tpu_custom_call.1} parent=1 // pred_fallthru
      _
    // Predicated region
    $region14: #{tpu_custom_call.1} parent=1 // pred_check
      _
    $region15: #{tpu_custom_call.1} parent=1 // pred_check_branch
      %20 = sbr.rel (0) target = $region17
    $region16: #{tpu_custom_call.1} parent=1 // pred_region
      _
    $region17: #{tpu_custom_call.1} parent=1 // pred_fallthru
      _
    // Predicated region
    $region18: #{tpu_custom_call.1} parent=1 // pred_check
      _
    $region19: #{tpu_custom_call.1} parent=1 // pred_check_branch
      %22 = sbr.rel (0) target = $region21
    $region20: #{tpu_custom_call.1} parent=1 // pred_region
      _
    $region21: #{tpu_custom_call.1} parent=1 // pred_fallthru
      _
    // Predicated region
    $region22: #{tpu_custom_call.1} parent=1 // pred_check
      _
    $region23: #{tpu_custom_call.1} parent=1 // pred_check_branch
      %24 = sbr.rel (0) target = $region25
    $region24: #{tpu_custom_call.1} parent=1 // pred_region
      _
    $region25: #{tpu_custom_call.1} parent=1 // pred_fallthru
      _
    // Predicated region
    $region26: #{tpu_custom_call.1} parent=1 // pred_check
      _
    $region27: #{tpu_custom_call.1} parent=1 // pred_check_branch
      %26 = sbr.rel (0) target = $region29
    $region28: #{tpu_custom_call.1} parent=1 // pred_region
      _
    $region29: #{tpu_custom_call.1} parent=1 // pred_fallthru
      _
    %v28 = vld [vmem:[%s0] sm:$0xff]
    %v29 = vld [vmem:[%s0 + $0x8] sm:$0xff]
    %v30 = vpack.c.bf16 %v29, %v28
    %v31 = vld [vmem:[%s1] sm:$0xf]
    %v32 = vld [vmem:[%s1 + $0x4] sm:$0xf]
    %v33 = vld [vmem:[%s1 + $0x8] sm:$0xf]
    %v34 = vld [vmem:[%s1 + $0xc] sm:$0xf]
    %v35 = vld [vmem:[%s2] sm:$0x1]
    %v37 = vlaneseq
    %v38 = vshrl.u32 %v37, 7
    %v39 = vsub.s32 0, %v38
    %v40 = vrot.slane %v35, %v39
    %v46 = vunpack.c.l.b16 %v31
    %v47 = vunpack.c.l.b16 %v32
    %v48 = vunpack.c.l.b16 %v33
    %v49 = vunpack.c.l.b16 %v34
    %v50 = vpack.c.b16 %v47, %v46
    %v51 = vpack.c.b16 %v49, %v48
    %vm54 = vcmask 261120
    %v56 = vsel %vm54, %v30, 0
    %58 = vmatprep.subr.bf16.mxu0 0
    %59 = vmatpush1.bf16.msra.mxu0 %v50
    %60 = vmatprep.subr.bf16.mxu0 0
    %61 = vmatpush1.bf16.msra.mxu0 %v51
    %62 = vmatprep.subr.bf16.mxu0 0
    %63 = vmatpush1.bf16.msra.mxu0 0
    %64 = vmatprep.subr.bf16.mxu0 0
    %65 = vmatpush1.bf16.msra.mxu0 0
    %66 = vmatprep.subr.bf16.mxu0 0
    %67 = vmatpush1.bf16.msra.mxu0 0
    %68 = vmatprep.subr.bf16.mxu0 0
    %69 = vmatpush1.bf16.msra.mxu0 0
    %70 = vmatprep.subr.bf16.mxu0 0
    %71 = vmatpush1.bf16.msra.mxu0 0
    %72 = vmatprep.subr.bf16.mxu0 0
    %73 = vmatpush1.bf16.msra.mxu0 0
    %74 = vmatprep.subr.bf16.mxu0 0
    %75 = vmatpush1.bf16.msra.mxu0 0
    %76 = vmatprep.subr.bf16.mxu0 0
    %77 = vmatpush1.bf16.msra.mxu0 0
    %78 = vmatprep.subr.bf16.mxu0 0
    %79 = vmatpush1.bf16.msra.mxu0 0
    %80 = vmatprep.subr.bf16.mxu0 0
    %81 = vmatpush1.bf16.msra.mxu0 0
    %82 = vmatprep.subr.bf16.mxu0 0
    %83 = vmatpush1.bf16.msra.mxu0 0
    %84 = vmatprep.subr.bf16.mxu0 0
    %85 = vmatpush1.bf16.msra.mxu0 0
    %86 = vmatprep.subr.bf16.mxu0 0
    %87 = vmatpush1.bf16.msra.mxu0 0
    %88 = vmatprep.subr.bf16.mxu0 0
    %89 = vmatpush1.bf16.msra.mxu0 0
    %90 = vmatprep.mubr.bf16.mxu0 0
    %91 = vmatmul.mubr.bf16.gmra.mrb[0].mxu0 %v56
    %v92 = vpop.f32.mrb[0].mxu0
    %v93 = vadd.f32 %v40, %v92
    %v94 = vpop.f32.mrb[0].mxu0
    %v95 = vpop.f32.mrb[0].mxu0
    %v96 = vadd.f32 %v40, %v95
    %v97 = vpop.f32.mrb[0].mxu0
    %98 = vdwg.mxu0
    %v99 = vmul.f32 %v93, 0.5
    %v100 = vmul.f32 %v96, 0.5
    %v101 = vtanh.pop %v99
    %v102 = vtanh.pop %v100
    %v103 = vadd.f32 %v101, 1.0
    %v104 = vadd.f32 %v102, 1.0
    %v105 = vmul.f32 %v99, %v103
    %v106 = vmul.f32 %v100, %v104
    %v107 = vpack.c.bf16 %v106, %v105
    %v108 = vld [vmem:[%s3] sm:$0xf]
    %v109 = vld [vmem:[%s3 + $0x4] sm:$0xf]
    %v110 = vld [vmem:[%s3 + $0x8] sm:$0xf]
    %v111 = vld [vmem:[%s3 + $0xc] sm:$0xf]
    %v112 = vld [vmem:[%s3 + $0x10] sm:$0xf]
    %v113 = vld [vmem:[%s3 + $0x14] sm:$0xf]
    %v114 = vld [vmem:[%s3 + $0x18] sm:$0xf]
    %v115 = vld [vmem:[%s3 + $0x1c] sm:$0xf]
    %v116 = vld [vmem:[%s3 + $0x20] sm:$0xf]
    %v117 = vld [vmem:[%s3 + $0x24] sm:$0xf]
    %v118 = vld [vmem:[%s3 + $0x28] sm:$0xf]
    %v119 = vld [vmem:[%s3 + $0x2c] sm:$0xf]
    %v120 = vld [vmem:[%s3 + $0x30] sm:$0xf]
    %v121 = vld [vmem:[%s3 + $0x34] sm:$0xf]
    %v122 = vld [vmem:[%s3 + $0x38] sm:$0xf]
    %v123 = vld [vmem:[%s3 + $0x3c] sm:$0xf]
    %v124 = vld [vmem:[%s4] sm:$0x1]
    %v126 = vlaneseq
    %v127 = vshrl.u32 %v126, 7
    %v128 = vsub.s32 0, %v127
    %v129 = vrot.slane %v124, %v128
    %v147 = vunpack.c.l.b16 %v108
    %v148 = vunpack.c.l.b16 %v109
    %v149 = vunpack.c.l.b16 %v110
    %v150 = vunpack.c.l.b16 %v111
    %v151 = vunpack.c.l.b16 %v112
    %v152 = vunpack.c.l.b16 %v113
    %v153 = vunpack.c.l.b16 %v114
    %v154 = vunpack.c.l.b16 %v115
    %v155 = vunpack.c.l.b16 %v116
    %v156 = vunpack.c.l.b16 %v117
    %v157 = vunpack.c.l.b16 %v118
    %v158 = vunpack.c.l.b16 %v119
    %v159 = vunpack.c.l.b16 %v120
    %v160 = vunpack.c.l.b16 %v121
    %v161 = vunpack.c.l.b16 %v122
    %v162 = vunpack.c.l.b16 %v123
    %v163 = vpack.c.b16 %v148, %v147
    %v164 = vpack.c.b16 %v150, %v149
    %v165 = vpack.c.b16 %v152, %v151
    %v166 = vpack.c.b16 %v154, %v153
    %v167 = vpack.c.b16 %v156, %v155
    %v168 = vpack.c.b16 %v158, %v157
    %v169 = vpack.c.b16 %v160, %v159
    %v170 = vpack.c.b16 %v162, %v161
    %179 = vmatprep.subr.bf16.mxu0 0
    %180 = vmatpush1.bf16.msra.mxu0 %v163
    %181 = vmatprep.subr.bf16.mxu0 0
    %182 = vmatpush1.bf16.msra.mxu0 %v164
    %183 = vmatprep.subr.bf16.mxu0 0
    %184 = vmatpush1.bf16.msra.mxu0 %v165
    %185 = vmatprep.subr.bf16.mxu0 0
    %186 = vmatpush1.bf16.msra.mxu0 %v166
    %187 = vmatprep.subr.bf16.mxu0 0
    %188 = vmatpush1.bf16.msra.mxu0 %v167
    %189 = vmatprep.subr.bf16.mxu0 0
    %190 = vmatpush1.bf16.msra.mxu0 %v168
    %191 = vmatprep.subr.bf16.mxu0 0
    %192 = vmatpush1.bf16.msra.mxu0 %v169
    %193 = vmatprep.subr.bf16.mxu0 0
    %194 = vmatpush1.bf16.msra.mxu0 %v170
    %195 = vmatprep.subr.bf16.mxu0 0
    %196 = vmatpush1.bf16.msra.mxu0 0
    %197 = vmatprep.subr.bf16.mxu0 0
    %198 = vmatpush1.bf16.msra.mxu0 0
    %199 = vmatprep.subr.bf16.mxu0 0
    %200 = vmatpush1.bf16.msra.mxu0 0
    %201 = vmatprep.subr.bf16.mxu0 0
    %202 = vmatpush1.bf16.msra.mxu0 0
    %203 = vmatprep.subr.bf16.mxu0 0
    %204 = vmatpush1.bf16.msra.mxu0 0
    %205 = vmatprep.subr.bf16.mxu0 0
    %206 = vmatpush1.bf16.msra.mxu0 0
    %207 = vmatprep.subr.bf16.mxu0 0
    %208 = vmatpush1.bf16.msra.mxu0 0
    %209 = vmatprep.subr.bf16.mxu0 0
    %210 = vmatpush1.bf16.msra.mxu0 0
    %211 = vmatprep.mubr.bf16.mxu0 0
    %212 = vmatmul.mubr.bf16.gmra.mrb[0].mxu0 %v107
    %v213 = vpop.f32.mrb[0].mxu0
    %v214 = vadd.f32 %v129, %v213
    %v215 = vpop.f32.mrb[0].mxu0
    %v216 = vpop.f32.mrb[0].mxu0
    %v217 = vadd.f32 %v129, %v216
    %v218 = vpop.f32.mrb[0].mxu0
    %219 = vdwg.mxu0
    %v220 = vadd.f32 %v28, %v214
    %v221 = vadd.f32 %v29, %v217
    %v222 = vld [vmem:[%s5] sm:$0x1]
    %v223 = vld [vmem:[%s6] sm:$0x1]
    %v224 = vsel %vm54, %v220, 0.0
    %225 = vadd.xlane.f32.xlu0 %v224
    %v226 = vpop.xlane.xlu0 %225
    %v227 = vsel %vm54, %v221, 0.0
    %228 = vadd.xlane.f32.xlu0 %v227
    %v229 = vpop.xlane.xlu0 %228
    %v230 = vrcp.pop 32.0
    %v231 = vmul.f32 %v226, %v230
    %v232 = vmul.f32 %v229, %v230
    %v233 = vsub.f32 %v220, %v231
    %v234 = vsub.f32 %v221, %v232
    %v235 = vmul.f32 %v233, %v233
    %v236 = vmul.f32 %v234, %v234
    %v237 = vsel %vm54, %v235, 0.0
    %238 = vadd.xlane.f32.xlu0 %v237
    %v239 = vpop.xlane.xlu0 %238
    %v240 = vsel %vm54, %v236, 0.0
    %241 = vadd.xlane.f32.xlu0 %v240
    %v242 = vpop.xlane.xlu0 %241
    %v243 = vmul.f32 %v239, %v230
    %v244 = vmul.f32 %v242, %v230
    %v245 = vadd.f32 %v243, 1e-05
    %v246 = vadd.f32 %v244, 1e-05
    %v247 = vrsqrt.pop %v245
    %v248 = vrsqrt.pop %v246
    %v249 = vmul.f32 %v233, %v247
    %v250 = vmul.f32 %v234, %v248
    %v252 = vlaneseq
    %v253 = vshrl.u32 %v252, 7
    %v254 = vsub.s32 0, %v253
    %v255 = vrot.slane %v222, %v254
    %v257 = vmul.f32 %v249, %v255
    %v258 = vmul.f32 %v250, %v255
    %v260 = vlaneseq
    %v261 = vshrl.u32 %v260, 7
    %v262 = vsub.s32 0, %v261
    %v263 = vrot.slane %v223, %v262
    %v265 = vadd.f32 %v257, %v263
    %v266 = vadd.f32 %v258, %v263
    %267 = vst.msk [vmem:[#allocation2] sm:$0xff] %vm54, %v265
    %268 = vst.msk [vmem:[#allocation2 + $0x8] sm:$0xff] %vm54, %v266
    // Predicated region
    $region30: #{tpu_custom_call.1} parent=1 // pred_check
      _
    $region31: #{tpu_custom_call.1} parent=1 // pred_check_branch
      %270 = sbr.rel (0) target = $region33
    $region32: #{tpu_custom_call.1} parent=1 // pred_region
      %s272 = ssub.s32 256, 256
      %273 = vsyncadd [#allocation3], %s272
      %s274 = sshll.u32 [#allocation2], 4
      %s275 = int_to_ptr.vmem [resolvable:$true] %s274
      %280 = dma.vmem_to_hbm [thread:$0]  %s275, 256, %s7, [#allocation3], 128, 128, 8
    $region33: #{tpu_custom_call.1} parent=1 // pred_fallthru
      _
    // Predicated region
    $region34: #{tpu_custom_call.1} parent=1 // pred_check
      _
    $region35: #{tpu_custom_call.1} parent=1 // pred_check_branch
      %282 = sbr.rel (0) target = $region37
    $region36: #{tpu_custom_call.1} parent=1 // pred_region
      %283 = dma.done [#allocation3], 256
    $region37: #{tpu_custom_call.1} parent=1 // pred_fallthru
      _
    %284 = vsyncpa [#allocation3], 1

</llo_original>
